<compile_context>
chip_gen: v7x
topology: tpu7x:2x2x1
jax: 0.10.0
libtpu: 0.0.40
codegen_flags: <defaults>
</compile_context>

<pallas_src>
import functools

import jax
import jax.numpy as jnp
from jax.experimental import pallas as pl
from jax.experimental.pallas import tpu as pltpu


def _leaky_relu(x, slope=0.2):
    # vmul + vmax (2 VPU ops); identical to where(x>0, x, s*x) for slope in (0,1).
    return jnp.maximum(x, slope * x)


def critic_low_kernel(x_ref, a_ref, w1_ref, p_ref, out_ref, *, n_states):
    x = x_ref[...]                      # [B, n_states], f32
    a = a_ref[...]                      # [B, n_actions], f32

    # Packed small-parameter buffer p_ref: [8, P] (P >= 64)
    #   row 0: gamma  (first n_states lanes)
    #   row 1: beta   (first n_states lanes)
    #   row 2: [bs | ba]          (64 lanes)
    #   row 3: w2 row (Linear(64,1).weight, transposed) (64 lanes)
    #   row 4: bl at lane 0
    gamma = p_ref[0:1, :n_states]       # [1, n_states]
    beta = p_ref[1:2, :n_states]        # [1, n_states]
    b1 = p_ref[2:3, :64]                # [1, 64]
    w2_row = p_ref[3:4, :64]            # [1, 64]
    bl = p_ref[4:5, 0:1]                # [1, 1]

    # ---- BatchNorm1d (training mode, biased variance, eps=1e-5) ----
    # Centered two-pass variance (matches PyTorch; avoids f32 cancellation).
    mean = jnp.mean(x, axis=0, keepdims=True)                       # [1, n_states]
    xc = x - mean
    var = jnp.mean(xc * xc, axis=0, keepdims=True)                  # [1, n_states]
    scale = gamma * jax.lax.rsqrt(var + 1e-5)
    x_n = xc * scale + beta                                          # [B, n_states]

    # ---- fused state+action branches: two MXU pushes against the row-blocks of
    # the block-diagonal packed weight ([ws|0] and [0|wa]) + one VPU add gives
    # [hs | ha] = the "concat" directly; one bias add, one activation. ----
    w1 = w1_ref[...]                                                 # [K, 64]
    h = jnp.dot(x_n, w1[:n_states, :], preferred_element_type=jnp.float32)
    h = h + jnp.dot(a, w1[n_states:, :], preferred_element_type=jnp.float32)
    h = _leaky_relu(h + b1)                                          # [B, 64]

    # ---- final Linear(64, 1) as a VPU multiply + lane reduce (no MXU pass) ----
    v = jnp.sum(h * w2_row, axis=-1, keepdims=True) + bl             # [B, 1]
    out_ref[...] = _leaky_relu(v).astype(out_ref.dtype)


def critic_low_forward(x, action, params):
    """x: [B, n_states] f32, action: [B, n_actions] f32 -> value [B, 1] f32."""
    B, n_states = x.shape
    n_actions = action.shape[1]
    K = n_states + n_actions

    w1 = params["w1"]
    pbuf = params["pbuf"]

    flops = 2 * B * K * 64 + 4 * B * 64          # two matmul pushes + reduce/elementwise
    bytes_accessed = 4 * (x.size + action.size + w1.size + pbuf.size + B)

    vmem = pl.BlockSpec(memory_space=pltpu.MemorySpace.VMEM)
    return pl.pallas_call(
        functools.partial(critic_low_kernel, n_states=n_states),
        out_shape=jax.ShapeDtypeStruct((B, 1), jnp.float32),
        in_specs=[vmem, vmem, vmem, vmem],
        out_specs=vmem,
        cost_estimate=pl.CostEstimate(
            flops=flops, transcendentals=n_states, bytes_accessed=bytes_accessed
        ),
    )(x, action, w1, pbuf)


def init_params(key, n_states, n_actions):
    """Init mirroring CriticLow._init_weights; also builds packed kernel params."""
    ks = jax.random.split(key, 6)
    # PyTorch Linear stores weight as [out, in]; we store it pre-transposed [in, out].
    ws = jax.random.normal(ks[0], (n_states, 32), jnp.float32) * 0.001
    bs = jax.random.uniform(ks[1], (32,), jnp.float32, -0.1, 0.1)
    wa = jax.random.normal(ks[2], (n_actions, 32), jnp.float32) * 0.001
    ba = jax.random.uniform(ks[3], (32,), jnp.float32, -0.1, 0.1)
    wl = jax.random.normal(ks[4], (64, 1), jnp.float32) * 0.001
    bl = jax.random.uniform(ks[5], (1,), jnp.float32, -0.1, 0.1)
    gamma = jnp.ones((n_states,), jnp.float32)
    beta = jnp.zeros((n_states,), jnp.float32)

    K = n_states + n_actions
    # Block-diagonal packed branch weight: [[ws, 0], [0, wa]] -> [K, 64].
    w1 = jnp.zeros((K, 64), jnp.float32)
    w1 = w1.at[:n_states, :32].set(ws).at[n_states:, 32:].set(wa)

    # Single packed small-parameter buffer [8, P], P >= max(64, n_states).
    P = max(64, n_states)
    pbuf = jnp.zeros((8, P), jnp.float32)
    pbuf = pbuf.at[0, :n_states].set(gamma)
    pbuf = pbuf.at[1, :n_states].set(beta)
    pbuf = pbuf.at[2, :32].set(bs).at[2, 32:64].set(ba)
    pbuf = pbuf.at[3, :64].set(wl[:, 0])
    pbuf = pbuf.at[4, 0].set(bl[0])

    return {
        # packed params consumed by the kernel
        "w1": w1, "pbuf": pbuf,
        # raw params kept for the pure-JAX reference
        "ws": ws, "bs": bs, "wa": wa, "ba": ba, "wl": wl, "bl": bl,
        "gamma": gamma, "beta": beta,
    }


def _reference_forward(x, action, p):
    """Pure-JAX reference matching the PyTorch module (uses the raw params)."""
    mean = jnp.mean(x, axis=0, keepdims=True)
    var = jnp.mean((x - mean) ** 2, axis=0, keepdims=True)
    xbn = (x - mean) / jnp.sqrt(var + 1e-5) * p["gamma"] + p["beta"]
    lrelu = lambda t: jnp.where(t > 0, t, 0.2 * t)
    hs = lrelu(xbn @ p["ws"] + p["bs"])
    ha = lrelu(action @ p["wa"] + p["ba"])
    cat = jnp.concatenate([hs, ha], axis=1)
    return lrelu(cat @ p["wl"] + p["bl"])


if __name__ == "__main__":
    B, n_states, n_actions = 8, 16, 8
    key = jax.random.PRNGKey(0)
    kx, ka, kp = jax.random.split(key, 3)

    x = jax.random.normal(kx, (B, n_states), jnp.float32)
    action = jax.random.normal(ka, (B, n_actions), jnp.float32)
    params = init_params(kp, n_states, n_actions)

    value = critic_low_forward(x, action, params)
    jax.block_until_ready(value)

    ref = _reference_forward(x, action, params)
    assert value.shape == (B, 1)
    assert jnp.allclose(value, ref, atol=1e-5, rtol=1e-4), (value, ref)

    print("KERNEL_OK")
</pallas_src>

<mosaic_0001>
module attributes {stable_mosaic.version = 11 : i64} {
  func.func @critic_low_kernel(%arg0: memref<8x16xf32, #tpu.memory_space<vmem>>, %arg1: memref<8x8xf32, #tpu.memory_space<vmem>>, %arg2: memref<24x64xf32, #tpu.memory_space<vmem>>, %arg3: memref<8x64xf32, #tpu.memory_space<vmem>>, %arg4: memref<8x1xf32, #tpu.memory_space<vmem>>) attributes {dimension_semantics = [], scalar_prefetch = 0 : i64, scratch_operands = 0 : i64, tpu.core_type = #tpu.core_type<tc>} {
    %c0 = arith.constant 0 : index
    %c0_0 = arith.constant 0 : index
    %0 = vector.load %arg0[%c0, %c0_0] : memref<8x16xf32, #tpu.memory_space<vmem>>, vector<8x16xf32>
    %c0_1 = arith.constant 0 : index
    %c0_2 = arith.constant 0 : index
    %1 = vector.load %arg1[%c0_1, %c0_2] : memref<8x8xf32, #tpu.memory_space<vmem>>, vector<8x8xf32>
    %c0_3 = arith.constant 0 : index
    %c0_4 = arith.constant 0 : index
    %2 = vector.load %arg3[%c0_3, %c0_4] : memref<8x64xf32, #tpu.memory_space<vmem>>, vector<1x16xf32>
    %c1 = arith.constant 1 : index
    %c0_5 = arith.constant 0 : index
    %3 = vector.load %arg3[%c1, %c0_5] : memref<8x64xf32, #tpu.memory_space<vmem>>, vector<1x16xf32>
    %c2 = arith.constant 2 : index
    %c0_6 = arith.constant 0 : index
    %4 = vector.load %arg3[%c2, %c0_6] : memref<8x64xf32, #tpu.memory_space<vmem>>, vector<1x64xf32>
    %c3 = arith.constant 3 : index
    %c0_7 = arith.constant 0 : index
    %5 = vector.load %arg3[%c3, %c0_7] : memref<8x64xf32, #tpu.memory_space<vmem>>, vector<1x64xf32>
    %c4 = arith.constant 4 : index
    %c0_8 = arith.constant 0 : index
    %6 = vector.load %arg3[%c4, %c0_8] : memref<8x64xf32, #tpu.memory_space<vmem>>, vector<1x1xf32>
    %cst = arith.constant dense<0.000000e+00> : vector<16xf32>
    %7 = vector.multi_reduction <add>, %0, %cst [0] : vector<8x16xf32> to vector<16xf32>
    %8 = vector.shape_cast %7 : vector<16xf32> to vector<1x16xf32>
    %cst_9 = arith.constant 8.000000e+00 : f32
    %9 = vector.broadcast %cst_9 : f32 to vector<1x16xf32>
    %10 = arith.divf %8, %9 : vector<1x16xf32>
    %11 = vector.broadcast %10 : vector<1x16xf32> to vector<8x16xf32>
    %12 = arith.subf %0, %11 : vector<8x16xf32>
    %13 = arith.mulf %12, %12 : vector<8x16xf32>
    %cst_10 = arith.constant dense<0.000000e+00> : vector<16xf32>
    %14 = vector.multi_reduction <add>, %13, %cst_10 [0] : vector<8x16xf32> to vector<16xf32>
    %15 = vector.shape_cast %14 : vector<16xf32> to vector<1x16xf32>
    %cst_11 = arith.constant 8.000000e+00 : f32
    %16 = vector.broadcast %cst_11 : f32 to vector<1x16xf32>
    %17 = arith.divf %15, %16 : vector<1x16xf32>
    %cst_12 = arith.constant 9.99999974E-6 : f32
    %18 = vector.broadcast %cst_12 : f32 to vector<1x16xf32>
    %19 = arith.addf %17, %18 : vector<1x16xf32>
    %20 = math.rsqrt %19 : vector<1x16xf32>
    %21 = arith.mulf %2, %20 : vector<1x16xf32>
    %22 = vector.broadcast %21 : vector<1x16xf32> to vector<8x16xf32>
    %23 = arith.mulf %12, %22 : vector<8x16xf32>
    %24 = vector.broadcast %3 : vector<1x16xf32> to vector<8x16xf32>
    %25 = arith.addf %23, %24 : vector<8x16xf32>
    %c0_13 = arith.constant 0 : index
    %c0_14 = arith.constant 0 : index
    %26 = vector.load %arg2[%c0_13, %c0_14] : memref<24x64xf32, #tpu.memory_space<vmem>>, vector<24x64xf32>
    %27 = vector.extract_strided_slice %26 {offsets = [0, 0], sizes = [16, 64], strides = [1, 1]} : vector<24x64xf32> to vector<16x64xf32>
    %cst_15 = arith.constant dense<0.000000e+00> : vector<8x64xf32>
    %28 = tpu.matmul %25, %27, %cst_15 {dimension_numbers = #tpu.dot_dimension_numbers<[1], [0], [0], [1], [0, 0, 1, 1], [], []>} : vector<8x16xf32>, vector<16x64xf32>, vector<8x64xf32> -> vector<8x64xf32>
    %29 = vector.extract_strided_slice %26 {offsets = [16, 0], sizes = [8, 64], strides = [1, 1]} : vector<24x64xf32> to vector<8x64xf32>
    %cst_16 = arith.constant dense<0.000000e+00> : vector<8x64xf32>
    %30 = tpu.matmul %1, %29, %cst_16 {dimension_numbers = #tpu.dot_dimension_numbers<[1], [0], [0], [1], [0, 0, 1, 1], [], []>} : vector<8x8xf32>, vector<8x64xf32>, vector<8x64xf32> -> vector<8x64xf32>
    %31 = arith.addf %28, %30 : vector<8x64xf32>
    %32 = vector.broadcast %4 : vector<1x64xf32> to vector<8x64xf32>
    %33 = arith.addf %31, %32 : vector<8x64xf32>
    %cst_17 = arith.constant 2.000000e-01 : f32
    %34 = vector.broadcast %cst_17 : f32 to vector<8x64xf32>
    %35 = arith.mulf %34, %33 : vector<8x64xf32>
    %36 = arith.maximumf %33, %35 : vector<8x64xf32>
    %37 = vector.broadcast %5 : vector<1x64xf32> to vector<8x64xf32>
    %38 = arith.mulf %36, %37 : vector<8x64xf32>
    %cst_18 = arith.constant dense<0.000000e+00> : vector<8xf32>
    %39 = vector.multi_reduction <add>, %38, %cst_18 [1] : vector<8x64xf32> to vector<8xf32>
    %40 = vector.shape_cast %39 : vector<8xf32> to vector<8x1xf32>
    %41 = vector.broadcast %6 : vector<1x1xf32> to vector<8x1xf32>
    %42 = arith.addf %40, %41 : vector<8x1xf32>
    %cst_19 = arith.constant 2.000000e-01 : f32
    %43 = vector.broadcast %cst_19 : f32 to vector<8x1xf32>
    %44 = arith.mulf %43, %42 : vector<8x1xf32>
    %45 = arith.maximumf %42, %44 : vector<8x1xf32>
    %c0_20 = arith.constant 0 : index
    %c0_21 = arith.constant 0 : index
    %46 = vector.load %arg4[%c0_20, %c0_21] : memref<8x1xf32, #tpu.memory_space<vmem>>, vector<8x1xf32>
    tpu.vector_store %arg4[%c0_20, %c0_21], %45 {strides = array<i32>} : memref<8x1xf32, #tpu.memory_space<vmem>>, vector<8x1xf32>,
    return
  }
}

</mosaic_0001>

<llo_original>
// kernel: tpu_custom_call.1
$region0: #{tpu_custom_call.1}
  #allocation0 [shape = 'u32[]', space=smem, size = 0x4, offset = 0x4, fixed_abs, tag = 'smem constant byte address 0x4 - core index']
  #allocation1 [shape = 'u32[144,128]{1,0:T(1,128)}', space=vmem, size = 0x12000, scoped, tag = 'internal scratch']
  %s0 = inlined_call_operand.hbm [shape: f32[8,16], index: 0, kind: input, shape index: {}]
  %s1 = inlined_call_operand.hbm [shape: f32[8,8], index: 1, kind: input, shape index: {}]
  %s2 = inlined_call_operand.hbm [shape: f32[24,64], index: 2, kind: input, shape index: {}]
  %s3 = inlined_call_operand.vmem [shape: f32[8,64], index: 3, kind: input, shape index: {}]
  %s4 = inlined_call_operand.vmem [shape: f32[8,1], index: 4, kind: output, shape index: {}]
  %s5 = sld [smem:[#allocation0]]
  $region38: #{tpu_custom_call.1} parent=0
    _
  %s7 = ssub.s32 1, %s5
  %s8 = scalar_select 0, %s7, %s5
  $region1: #{tpu_custom_call.1} parent=0
    #allocation2 [shape = 'u8[4096]{0}', space=vmem, size = 0x1000, scoped, tag = 'input window, operand 0, single buffered']
    #allocation3 [shape = 's32[1]{0}', space=sflag, size = 0x4, scoped, tag = 'scoped memory for tpu_custom_call.1']
    #allocation4 [shape = 'u8[4096]{0}', space=vmem, size = 0x1000, scoped, tag = 'input window, operand 1, single buffered']
    #allocation5 [shape = 's32[1]{0}', space=sflag, size = 0x4, scoped, tag = 'scoped memory for tpu_custom_call.1']
    #allocation6 [shape = 'u8[12288]{0}', space=vmem, size = 0x3000, scoped, tag = 'input window, operand 2, single buffered']
    %9 = vsyncpa [#allocation3], 0
    %10 = vsyncpa [#allocation5], 0
    // Predicated region
    $region2: #{tpu_custom_call.1} parent=1 // pred_check
      _
    $region3: #{tpu_custom_call.1} parent=1 // pred_check_branch
      %12 = sbr.rel (0) target = $region5
    $region4: #{tpu_custom_call.1} parent=1 // pred_region
      %s14 = ssub.s32 128, 128
      %15 = vsyncadd [#allocation3], %s14
      %s17 = sshll.u32 [#allocation2], 4
      %s18 = int_to_ptr.vmem [resolvable:$true] %s17
      %20 = dma.hbm_to_vmem [thread:$0]  %s0, 128, %s18, [#allocation3]
    $region5: #{tpu_custom_call.1} parent=1 // pred_fallthru
      _
    // Predicated region
    $region6: #{tpu_custom_call.1} parent=1 // pred_check
      _
    $region7: #{tpu_custom_call.1} parent=1 // pred_check_branch
      %22 = sbr.rel (0) target = $region9
    $region8: #{tpu_custom_call.1} parent=1 // pred_region
      %s24 = ssub.s32 128, 128
      %25 = vsyncadd [#allocation5], %s24
      %s27 = sshll.u32 [#allocation4], 4
      %s28 = int_to_ptr.vmem [resolvable:$true] %s27
      %30 = dma.hbm_to_vmem [thread:$0]  %s1, 128, %s28, [#allocation5]
    $region9: #{tpu_custom_call.1} parent=1 // pred_fallthru
      _
    // Predicated region
    $region10: #{tpu_custom_call.1} parent=1 // pred_check
      _
    $region11: #{tpu_custom_call.1} parent=1 // pred_check_branch
      %32 = sbr.rel (0) target = $region13
    $region12: #{tpu_custom_call.1} parent=1 // pred_region
      %s34 = ssub.s32 384, 384
      %35 = vsyncadd [#allocation5], %s34
      %s36 = sshll.u32 [#allocation6], 4
      %s37 = int_to_ptr.vmem [resolvable:$true] %s36
      %42 = dma.hbm_to_vmem [thread:$0]  %s2, 384, %s37, [#allocation5], 128, 128, 8
    $region13: #{tpu_custom_call.1} parent=1 // pred_fallthru
      _
    // Predicated region
    $region14: #{tpu_custom_call.1} parent=1 // pred_check
      _
    $region15: #{tpu_custom_call.1} parent=1 // pred_check_branch
      %44 = sbr.rel (0) target = $region17
    $region16: #{tpu_custom_call.1} parent=1 // pred_region
      _
    $region17: #{tpu_custom_call.1} parent=1 // pred_fallthru
      _
    // Predicated region
    $region18: #{tpu_custom_call.1} parent=1 // pred_check
      _
    $region19: #{tpu_custom_call.1} parent=1 // pred_check_branch
      %46 = sbr.rel (0) target = $region21
    $region20: #{tpu_custom_call.1} parent=1 // pred_region
      %47 = dma.done [#allocation3], 128
    $region21: #{tpu_custom_call.1} parent=1 // pred_fallthru
      _
    // Predicated region
    $region22: #{tpu_custom_call.1} parent=1 // pred_check
      _
    $region23: #{tpu_custom_call.1} parent=1 // pred_check_branch
      %49 = sbr.rel (0) target = $region25
    $region24: #{tpu_custom_call.1} parent=1 // pred_region
      %50 = dma.done [#allocation5], 128
    $region25: #{tpu_custom_call.1} parent=1 // pred_fallthru
      _
    // Predicated region
    $region26: #{tpu_custom_call.1} parent=1 // pred_check
      _
    $region27: #{tpu_custom_call.1} parent=1 // pred_check_branch
      %52 = sbr.rel (0) target = $region29
    $region28: #{tpu_custom_call.1} parent=1 // pred_region
      %53 = dma.done [#allocation5], 384
    $region29: #{tpu_custom_call.1} parent=1 // pred_fallthru
      _
    %v54 = vld [vmem:[#allocation2] sm:$0xff]
    %v55 = vld [vmem:[#allocation4] sm:$0xff]
    %v56 = vld [vmem:[%s3] sm:$0x1]
    %v57 = vld [vmem:[%s3 + $0x1] sm:$0x1]
    %v58 = vld [vmem:[%s3 + $0x2] sm:$0x1]
    %v59 = vld [vmem:[%s3 + $0x3] sm:$0x1]
    %v60 = vld [vmem:[%s3 + $0x4] sm:$0x1]
    %vm61 = vcmask 130048
    %v62 = vsel %vm61, %v54, 0.0
    %v63 = vrot.slane %v62, 4
    %v64 = vadd.f32 %v62, %v63
    %v65 = vrot.slane %v64, 2
    %v66 = vadd.f32 %v64, %v65
    %v67 = vrot.slane %v66, 1
    %v68 = vadd.f32 %v66, %v67
    %v69 = vrcp.pop 8.0
    %v70 = vmul.f32 %v68, %v69
    %v71 = vsub.f32 %v54, %v70
    %v72 = vmul.f32 %v71, %v71
    %v73 = vsel %vm61, %v72, 0.0
    %v74 = vrot.slane %v73, 4
    %v75 = vadd.f32 %v73, %v74
    %v76 = vrot.slane %v75, 2
    %v77 = vadd.f32 %v75, %v76
    %v78 = vrot.slane %v77, 1
    %v79 = vadd.f32 %v77, %v78
    %v80 = vmul.f32 %v79, %v69
    %v81 = vadd.f32 %v80, 1e-05
    %v82 = vrsqrt.pop %v81
    %v83 = vmul.f32 %v56, %v82
    %v84 = vlaneseq
    %v85 = vshrl.u32 %v84, 7
    %v86 = vsub.s32 0, %v85
    %v87 = vrot.slane %v83, %v86
    %v88 = vmul.f32 %v71, %v87
    %v89 = vlaneseq
    %v90 = vshrl.u32 %v89, 7
    %v91 = vsub.s32 0, %v90
    %v92 = vrot.slane %v57, %v91
    %v93 = vadd.f32 %v88, %v92
    %v94 = vld [vmem:[#allocation6] sm:$0xff]
    %v95 = vld [vmem:[#allocation6 + $0x8] sm:$0xff]
    %v96 = vld [vmem:[#allocation6 + $0x10] sm:$0xff]
    %vm97 = vcmask 64512
    %v99 = vsel %vm97, %v55, 0
    %101 = vmatprep.subr.mxu0 0.0
    %102 = vmatpush1.msra.mxu0 %v96
    %103 = vmatprep.subr.mxu0 0.0
    %104 = vmatpush1.msra.mxu0 0.0
    %105 = vmatprep.subr.mxu0 0.0
    %106 = vmatpush1.msra.mxu0 0.0
    %107 = vmatprep.subr.mxu0 0.0
    %108 = vmatpush1.msra.mxu0 0.0
    %109 = vmatprep.subr.mxu0 0.0
    %110 = vmatpush1.msra.mxu0 0.0
    %111 = vmatprep.subr.mxu0 0.0
    %112 = vmatpush1.msra.mxu0 0.0
    %113 = vmatprep.subr.mxu0 0.0
    %114 = vmatpush1.msra.mxu0 0.0
    %115 = vmatprep.subr.mxu0 0.0
    %116 = vmatpush1.msra.mxu0 0.0
    %117 = vmatprep.subr.mxu0 0.0
    %118 = vmatpush1.msra.mxu0 0.0
    %119 = vmatprep.subr.mxu0 0.0
    %120 = vmatpush1.msra.mxu0 0.0
    %121 = vmatprep.subr.mxu0 0.0
    %122 = vmatpush1.msra.mxu0 0.0
    %123 = vmatprep.subr.mxu0 0.0
    %124 = vmatpush1.msra.mxu0 0.0
    %125 = vmatprep.subr.mxu0 0.0
    %126 = vmatpush1.msra.mxu0 0.0
    %127 = vmatprep.subr.mxu0 0.0
    %128 = vmatpush1.msra.mxu0 0.0
    %129 = vmatprep.subr.mxu0 0.0
    %130 = vmatpush1.msra.mxu0 0.0
    %131 = vmatprep.subr.mxu0 0.0
    %132 = vmatpush1.msra.mxu0 0.0
    %133 = vmatprep.subr.mxu0 0.0
    %134 = vmatpush1.msra.mxu0 0.0
    %135 = vmatprep.subr.mxu0 0.0
    %136 = vmatpush1.msra.mxu0 0.0
    %137 = vmatprep.subr.mxu0 0.0
    %138 = vmatpush1.msra.mxu0 0.0
    %139 = vmatprep.subr.mxu0 0.0
    %140 = vmatpush1.msra.mxu0 0.0
    %141 = vmatprep.subr.mxu0 0.0
    %142 = vmatpush1.msra.mxu0 0.0
    %143 = vmatprep.subr.mxu0 0.0
    %144 = vmatpush1.msra.mxu0 0.0
    %145 = vmatprep.subr.mxu0 0.0
    %146 = vmatpush1.msra.mxu0 0.0
    %147 = vmatprep.subr.mxu0 0.0
    %148 = vmatpush1.msra.mxu0 0.0
    %149 = vmatprep.subr.mxu0 0.0
    %150 = vmatpush1.msra.mxu0 0.0
    %151 = vmatprep.subr.mxu0 0.0
    %152 = vmatpush1.msra.mxu0 0.0
    %153 = vmatprep.subr.mxu0 0.0
    %154 = vmatpush1.msra.mxu0 0.0
    %155 = vmatprep.subr.mxu0 0.0
    %156 = vmatpush1.msra.mxu0 0.0
    %157 = vmatprep.subr.mxu0 0.0
    %158 = vmatpush1.msra.mxu0 0.0
    %159 = vmatprep.subr.mxu0 0.0
    %160 = vmatpush1.msra.mxu0 0.0
    %161 = vmatprep.subr.mxu0 0.0
    %162 = vmatpush1.msra.mxu0 0.0
    %163 = vmatprep.subr.mxu0 0.0
    %164 = vmatpush1.msra.mxu0 0.0
    %165 = vmatprep.mubr.f32.mxu0 0.0
    %166 = vmatmul.mubr.f32.gmra.mrb[0].mxu0 %v99
    %v167 = vpop.f32.mrb[0].mxu0
    %v168 = vadd.f32 0.0, %v167
    %v169 = vpop.f32.mrb[0].mxu0
    %170 = vdwg.mxu0
    %v172 = vsel %vm61, %v93, 0
    %174 = vmatprep.subr.mxu0 0.0
    %175 = vmatpush1.msra.mxu0 %v94
    %176 = vmatprep.subr.mxu0 0.0
    %177 = vmatpush1.msra.mxu0 %v95
    %178 = vmatprep.subr.mxu0 0.0
    %179 = vmatpush1.msra.mxu0 0.0
    %180 = vmatprep.subr.mxu0 0.0
    %181 = vmatpush1.msra.mxu0 0.0
    %182 = vmatprep.subr.mxu0 0.0
    %183 = vmatpush1.msra.mxu0 0.0
    %184 = vmatprep.subr.mxu0 0.0
    %185 = vmatpush1.msra.mxu0 0.0
    %186 = vmatprep.subr.mxu0 0.0
    %187 = vmatpush1.msra.mxu0 0.0
    %188 = vmatprep.subr.mxu0 0.0
    %189 = vmatpush1.msra.mxu0 0.0
    %190 = vmatprep.subr.mxu0 0.0
    %191 = vmatpush1.msra.mxu0 0.0
    %192 = vmatprep.subr.mxu0 0.0
    %193 = vmatpush1.msra.mxu0 0.0
    %194 = vmatprep.subr.mxu0 0.0
    %195 = vmatpush1.msra.mxu0 0.0
    %196 = vmatprep.subr.mxu0 0.0
    %197 = vmatpush1.msra.mxu0 0.0
    %198 = vmatprep.subr.mxu0 0.0
    %199 = vmatpush1.msra.mxu0 0.0
    %200 = vmatprep.subr.mxu0 0.0
    %201 = vmatpush1.msra.mxu0 0.0
    %202 = vmatprep.subr.mxu0 0.0
    %203 = vmatpush1.msra.mxu0 0.0
    %204 = vmatprep.subr.mxu0 0.0
    %205 = vmatpush1.msra.mxu0 0.0
    %206 = vmatprep.subr.mxu0 0.0
    %207 = vmatpush1.msra.mxu0 0.0
    %208 = vmatprep.subr.mxu0 0.0
    %209 = vmatpush1.msra.mxu0 0.0
    %210 = vmatprep.subr.mxu0 0.0
    %211 = vmatpush1.msra.mxu0 0.0
    %212 = vmatprep.subr.mxu0 0.0
    %213 = vmatpush1.msra.mxu0 0.0
    %214 = vmatprep.subr.mxu0 0.0
    %215 = vmatpush1.msra.mxu0 0.0
    %216 = vmatprep.subr.mxu0 0.0
    %217 = vmatpush1.msra.mxu0 0.0
    %218 = vmatprep.subr.mxu0 0.0
    %219 = vmatpush1.msra.mxu0 0.0
    %220 = vmatprep.subr.mxu0 0.0
    %221 = vmatpush1.msra.mxu0 0.0
    %222 = vmatprep.subr.mxu0 0.0
    %223 = vmatpush1.msra.mxu0 0.0
    %224 = vmatprep.subr.mxu0 0.0
    %225 = vmatpush1.msra.mxu0 0.0
    %226 = vmatprep.subr.mxu0 0.0
    %227 = vmatpush1.msra.mxu0 0.0
    %228 = vmatprep.subr.mxu0 0.0
    %229 = vmatpush1.msra.mxu0 0.0
    %230 = vmatprep.subr.mxu0 0.0
    %231 = vmatpush1.msra.mxu0 0.0
    %232 = vmatprep.subr.mxu0 0.0
    %233 = vmatpush1.msra.mxu0 0.0
    %234 = vmatprep.subr.mxu0 0.0
    %235 = vmatpush1.msra.mxu0 0.0
    %236 = vmatprep.subr.mxu0 0.0
    %237 = vmatpush1.msra.mxu0 0.0
    %238 = vmatprep.mubr.f32.mxu0 0.0
    %239 = vmatmul.mubr.f32.gmra.mrb[0].mxu0 %v172
    %v240 = vpop.f32.mrb[0].mxu0
    %v241 = vadd.f32 %v168, %v240
    %v242 = vpop.f32.mrb[0].mxu0
    %243 = vdwg.mxu0
    %v244 = vlaneseq
    %v245 = vshrl.u32 %v244, 7
    %v246 = vsub.s32 0, %v245
    %v247 = vrot.slane %v58, %v246
    %v248 = vadd.f32 %v241, %v247
    %v249 = vmul.f32 %v248, 0.2
    %v250 = vmax.f32 %v248, %v249
    %v251 = vlaneseq
    %v252 = vshrl.u32 %v251, 7
    %v253 = vsub.s32 0, %v252
    %v254 = vrot.slane %v59, %v253
    %v255 = vmul.f32 %v250, %v254
    %vm256 = vcmask 523264
    %v257 = vsel %vm256, %v255, 0.0
    %258 = vadd.xlane.f32.xlu0 %v257
    %v259 = vpop.xlane.xlu0 %258
    %v260 = vlaneseq
    %v261 = vshrl.u32 %v260, 7
    %v262 = vsub.s32 0, %v261
    %v263 = vrot.slane %v60, %v262
    %v264 = vadd.f32 %v259, %v263
    %v265 = vmul.f32 %v264, 0.2
    %v266 = vmax.f32 %v264, %v265
    %vm267 = vcmask 7168
    %268 = vst.msk [vmem:[%s4] sm:$0xff] %vm267, %v266
    // Predicated region
    $region30: #{tpu_custom_call.1} parent=1 // pred_check
      _
    $region31: #{tpu_custom_call.1} parent=1 // pred_check_branch
      %270 = sbr.rel (0) target = $region33
    $region32: #{tpu_custom_call.1} parent=1 // pred_region
      _
    $region33: #{tpu_custom_call.1} parent=1 // pred_fallthru
      _
    // Predicated region
    $region34: #{tpu_custom_call.1} parent=1 // pred_check
      _
    $region35: #{tpu_custom_call.1} parent=1 // pred_check_branch
      %272 = sbr.rel (0) target = $region37
    $region36: #{tpu_custom_call.1} parent=1 // pred_region
      _
    $region37: #{tpu_custom_call.1} parent=1 // pred_fallthru
      _
    %273 = vsyncpa [#allocation3], 1
    %274 = vsyncpa [#allocation5], 1

</llo_original>
